<compile_context>
chip_gen: v5e
topology: v5e:2x2
jax: 0.10.0
libtpu: 0.0.40
codegen_flags: <defaults>
</compile_context>

<pallas_src>
from functools import partial

import jax
import jax.numpy as jnp
from jax import lax
from jax.experimental import pallas as pl
from jax.experimental.pallas import tpu as pltpu

# 3x3 tap offsets (dh, dw), row-major.  This order ties together the im2col
# row order, the flattened weight K order, and the padding masks.
_TAP_OFFSETS = tuple((dh, dw) for dh in (-1, 0, 1) for dw in (-1, 0, 1))
_CENTER_TAP = 4  # offset (0, 0)


def _round_up(n: int, m: int) -> int:
    return (n + m - 1) // m * m


def _tap_masks(H, W):
    """(9, H*W) float32: 1 where tap (dh, dw) reads inside the image, else 0."""
    p = jnp.arange(H * W, dtype=jnp.int32)
    row, col = p // W, p % W
    masks = []
    for dh, dw in _TAP_OFFSETS:
        ok = (row + dh >= 0) & (row + dh < H) & (col + dw >= 0) & (col + dw < W)
        masks.append(ok.astype(jnp.float32))
    return jnp.stack(masks, axis=0)


def encoder_block_kernel(x_ref, w1_ref, w2_ref, b2_ref, mask_ref, out_ref, *,
                         img_w: int, mxu_dtype):
    """One batch-group per grid step, planar (channels x fused-lane) layout.

    x_ref   : (Cp, L)      padded input; rows >= C are zero except the last,
                           which is all-ones (carries conv1's bias).
    w1_ref  : (Chp, 9*Cp)  conv1 weights, tap-major / channel-minor K, with b1
                           folded into the ones-channel center-tap column.
    w2_ref  : (Cp, 9*Chp)  conv2 weights (out-channels zero-padded to Cp).
    b2_ref  : (Cp, 1)      conv2 bias (zero-padded).
    mask_ref: (9, L)       per-tap zero-padding validity masks.
    out_ref : (Cp, L)      padded output (rows >= C discarded by the wrapper).
    """
    x = x_ref[...]                       # (Cp, L) — reused for the residual
    masks = mask_ref[...]                # (9, L)

    def im2col(a):
        # (cin, L) -> (9*cin, L).  Static lane shifts; ONE masked multiply for
        # all 9 taps.  The masks zero every position whose tap crosses an
        # image border, so roll wrap-around (including across fused batch
        # elements) contributes nothing.
        shifted = [a if (dh == 0 and dw == 0)
                   else jnp.roll(a, -(dh * img_w + dw), axis=1)
                   for dh, dw in _TAP_OFFSETS]
        slab = jnp.stack(shifted, axis=0) * masks[:, None, :]   # (9, cin, L)
        # cin is padded to a multiple of 8 -> this collapse is layout-free.
        return slab.reshape(-1, a.shape[1])

    # conv1 (3x3 SAME) + bias as ONE MXU matmul: (Chp, 9*Cp) @ (9*Cp, L).
    h = jnp.dot(w1_ref[...].astype(mxu_dtype), im2col(x).astype(mxu_dtype),
                preferred_element_type=jnp.float32)
    h = h * jax.nn.sigmoid(h)            # SiLU in f32 (sigmoid -> EUP)

    # conv2 over the zero-padded SiLU output, then bias + residual.
    z = jnp.dot(w2_ref[...].astype(mxu_dtype), im2col(h).astype(mxu_dtype),
                preferred_element_type=jnp.float32)
    out_ref[...] = (z + b2_ref[...] + x).astype(out_ref.dtype)


@partial(jax.jit, static_argnames=("mxu_dtype",))
def encoder_block(x_nchw, w1_oihw, b1, w2_oihw, b2, *, mxu_dtype=jnp.float32):
    """x_nchw: (N, C, H, W) -> (N, C, H, W).  Matches EncoderBlock.forward.

    Set mxu_dtype=jnp.bfloat16 to feed the MXU bf16 operands at MXU-bound
    sizes (re-verify tolerance); SiLU / bias / residual stay f32 either way.
    """
    N, C, H, W = x_nchw.shape
    Ch = w1_oihw.shape[0]
    HW = H * W

    # Sublane-aligned channel counts.  Cp reserves one extra all-ones row that
    # carries conv1's bias through the matmul.
    Cp = _round_up(C + 1, 8)
    Chp = _round_up(Ch, 8)

    # Grid: fold the batch into the lane axis; keep at most 2 grid steps
    # (2 when the batch splits evenly -> both v7x TensorCores stay busy).
    num_steps = 2 if (N >= 2 and N % 2 == 0 and ((N // 2) * HW) % 128 == 0) else 1
    B = N // num_steps                   # batch elements per grid step
    LB = B * HW                          # fused lane width per step
    # TODO(synk): for large H*W, additionally tile the lane axis in 128-lane
    # multiples with a +-W halo (or accumulate per-tap sub-matmuls) and set
    # pltpu.CompilerParams(vmem_limit_bytes=...) — v7x has only 64 MiB VMEM.

    # Activations: (N, C, H, W) -> (C, N*HW), channels padded to Cp; the last
    # padded row is all-ones (bias carrier).  Reshapes are free; the single
    # (N, C, HW) -> (C, N, HW) transpose is the only wrapper data movement.
    x_flat = jnp.transpose(x_nchw.reshape(N, C, HW), (1, 0, 2)).reshape(C, N * HW)
    pad = jnp.zeros((Cp - C, N * HW), x_nchw.dtype).at[-1, :].set(1.0)
    x_pad = jnp.concatenate([x_flat, pad], axis=0)                    # (Cp, N*HW)

    # conv1 weights: (Ch, C, 3, 3) -> (Chp, 9*Cp), tap-major / channel-minor K;
    # padded input channels get zero weight except the ones-row center tap,
    # which carries b1.  Padded hidden rows (if any) are all-zero.
    w1_k = jnp.transpose(w1_oihw, (0, 2, 3, 1)).reshape(Ch, 9, C)
    w1_k = jnp.concatenate([w1_k, jnp.zeros((Ch, 9, Cp - C), w1_k.dtype)], axis=2)
    w1_k = w1_k.at[:, _CENTER_TAP, Cp - 1].set(b1)
    w1_k = jnp.concatenate([w1_k, jnp.zeros((Chp - Ch, 9, Cp), w1_k.dtype)], axis=0)
    w1_flat = w1_k.reshape(Chp, 9 * Cp)

    # conv2 weights: (C, Ch, 3, 3) -> (Cp, 9*Chp); padded in/out channels zero.
    w2_k = jnp.transpose(w2_oihw, (0, 2, 3, 1)).reshape(C, 9, Ch)
    w2_k = jnp.concatenate([w2_k, jnp.zeros((C, 9, Chp - Ch), w2_k.dtype)], axis=2)
    w2_k = jnp.concatenate([w2_k, jnp.zeros((Cp - C, 9, Chp), w2_k.dtype)], axis=0)
    w2_flat = w2_k.reshape(Cp, 9 * Chp)

    b2_pad = jnp.concatenate([b2, jnp.zeros((Cp - C,), b2.dtype)]).reshape(Cp, 1)
    masks = jnp.tile(_tap_masks(H, W), (1, B))                        # (9, LB)

    out_pad = pl.pallas_call(
        partial(encoder_block_kernel, img_w=W, mxu_dtype=mxu_dtype),
        out_shape=jax.ShapeDtypeStruct((Cp, N * HW), x_nchw.dtype),
        grid=(num_steps,),
        in_specs=[
            pl.BlockSpec((Cp, LB), lambda g: (0, g)),
            pl.BlockSpec((Chp, 9 * Cp), lambda g: (0, 0)),
            pl.BlockSpec((Cp, 9 * Chp), lambda g: (0, 0)),
            pl.BlockSpec((Cp, 1), lambda g: (0, 0)),
            pl.BlockSpec((9, LB), lambda g: (0, 0)),
        ],
        out_specs=pl.BlockSpec((Cp, LB), lambda g: (0, g)),
        compiler_params=pltpu.CompilerParams(
            dimension_semantics=("parallel",)),   # v7x: one batch group per TC
    )(x_pad, w1_flat, w2_flat, b2_pad, masks)

    out = out_pad[:C]                             # drop padded output channels
    return out.reshape(C, N, HW).transpose(1, 0, 2).reshape(N, C, H, W)


def make_weight_norm_conv(key, cin, cout):
    """Deterministic weight-norm Conv2d params: weight = g * v / ||v|| (OIHW)."""
    kv, kg, kb = jax.random.split(key, 3)
    v = jax.random.normal(kv, (cout, cin, 3, 3), jnp.float32) * 0.1
    g = jax.random.uniform(kg, (cout,), jnp.float32, minval=0.5, maxval=1.5)
    norm = jnp.sqrt(jnp.sum(v * v, axis=(1, 2, 3)))
    w_oihw = v * (g / norm)[:, None, None, None]
    b = jax.random.normal(kb, (cout,), jnp.float32) * 0.1
    return w_oihw, b


def reference_encoder_block(x, w1_oihw, b1, w2_oihw, b2):
    """Pure-JAX reference (lax.conv, NCHW/OIHW) for correctness checking."""
    dn = ("NCHW", "OIHW", "NCHW")
    hp = lax.Precision.HIGHEST
    z = lax.conv_general_dilated(x, w1_oihw, (1, 1), "SAME",
                                 dimension_numbers=dn, precision=hp)
    z = z + b1[None, :, None, None]
    z = jax.nn.silu(z)
    z = lax.conv_general_dilated(z, w2_oihw, (1, 1), "SAME",
                                 dimension_numbers=dn, precision=hp)
    z = z + b2[None, :, None, None]
    return z + x


if __name__ == "__main__":
    # Shapes consistent with EncoderBlock(num_channels=4, hidden_ratio=2).
    num_channels = 4
    hidden_ratio = 2
    hidden_channels = num_channels * hidden_ratio
    N, H, W = 2, 16, 16

    key = jax.random.PRNGKey(0)
    kx, k1, k2 = jax.random.split(key, 3)

    x = jax.random.normal(kx, (N, num_channels, H, W), jnp.float32)
    w1, b1 = make_weight_norm_conv(k1, num_channels, hidden_channels)
    w2, b2 = make_weight_norm_conv(k2, hidden_channels, num_channels)

    out = jax.block_until_ready(encoder_block(x, w1, b1, w2, b2))

    ref = reference_encoder_block(x, w1, b1, w2, b2)
    assert out.shape == (N, num_channels, H, W)
    assert jnp.allclose(out, ref, atol=5e-3, rtol=5e-3), "mismatch vs JAX reference"

    print("KERNEL_OK")
</pallas_src>

<mosaic_0001>
module attributes {stable_mosaic.version = 11 : i64} {
  func.func @encoder_block_kernel(%arg0: i32, %arg1: memref<8x256xf32, #tpu.memory_space<vmem>>, %arg2: memref<8x72xf32, #tpu.memory_space<vmem>>, %arg3: memref<8x72xf32, #tpu.memory_space<vmem>>, %arg4: memref<8x1xf32, #tpu.memory_space<vmem>>, %arg5: memref<9x256xf32, #tpu.memory_space<vmem>>, %arg6: memref<8x256xf32, #tpu.memory_space<vmem>>) attributes {dimension_semantics = [#tpu.dimension_semantics<parallel>], iteration_bounds = array<i64: 2>, scalar_prefetch = 0 : i64, scratch_operands = 0 : i64, tpu.core_type = #tpu.core_type<tc>, window_params = [{transform_indices = @transform_0, window_bounds = array<i64: 8, 256>}, {pipeline_mode = #tpu.pipeline_mode<synchronous>, transform_indices = @transform_1, window_bounds = array<i64: 8, 72>}, {pipeline_mode = #tpu.pipeline_mode<synchronous>, transform_indices = @transform_2, window_bounds = array<i64: 8, 72>}, {pipeline_mode = #tpu.pipeline_mode<synchronous>, transform_indices = @transform_3, window_bounds = array<i64: 8, 1>}, {pipeline_mode = #tpu.pipeline_mode<synchronous>, transform_indices = @transform_4, window_bounds = array<i64: 9, 256>}, {transform_indices = @transform_5, window_bounds = array<i64: 8, 256>}]} {
    %c0 = arith.constant 0 : index
    %c0_0 = arith.constant 0 : index
    %0 = vector.load %arg1[%c0, %c0_0] : memref<8x256xf32, #tpu.memory_space<vmem>>, vector<8x256xf32>
    %c0_1 = arith.constant 0 : index
    %c0_2 = arith.constant 0 : index
    %1 = vector.load %arg5[%c0_1, %c0_2] : memref<9x256xf32, #tpu.memory_space<vmem>>, vector<9x256xf32>
    %c0_3 = arith.constant 0 : index
    %c0_4 = arith.constant 0 : index
    %2 = vector.load %arg2[%c0_3, %c0_4] : memref<8x72xf32, #tpu.memory_space<vmem>>, vector<8x72xf32>
    %3 = vector.extract_strided_slice %0 {offsets = [0, 239], sizes = [8, 17], strides = [1, 1]} : vector<8x256xf32> to vector<8x17xf32>
    %4 = vector.extract_strided_slice %0 {offsets = [0, 0], sizes = [8, 239], strides = [1, 1]} : vector<8x256xf32> to vector<8x239xf32>
    %5 = tpu.concatenate %3, %4 in 1 : vector<8x17xf32>, vector<8x239xf32> -> vector<8x256xf32>
    %6 = vector.extract_strided_slice %0 {offsets = [0, 240], sizes = [8, 16], strides = [1, 1]} : vector<8x256xf32> to vector<8x16xf32>
    %7 = vector.extract_strided_slice %0 {offsets = [0, 0], sizes = [8, 240], strides = [1, 1]} : vector<8x256xf32> to vector<8x240xf32>
    %8 = tpu.concatenate %6, %7 in 1 : vector<8x16xf32>, vector<8x240xf32> -> vector<8x256xf32>
    %9 = vector.extract_strided_slice %0 {offsets = [0, 241], sizes = [8, 15], strides = [1, 1]} : vector<8x256xf32> to vector<8x15xf32>
    %10 = vector.extract_strided_slice %0 {offsets = [0, 0], sizes = [8, 241], strides = [1, 1]} : vector<8x256xf32> to vector<8x241xf32>
    %11 = tpu.concatenate %9, %10 in 1 : vector<8x15xf32>, vector<8x241xf32> -> vector<8x256xf32>
    %12 = vector.extract_strided_slice %0 {offsets = [0, 255], sizes = [8, 1], strides = [1, 1]} : vector<8x256xf32> to vector<8x1xf32>
    %13 = vector.extract_strided_slice %0 {offsets = [0, 0], sizes = [8, 255], strides = [1, 1]} : vector<8x256xf32> to vector<8x255xf32>
    %14 = tpu.concatenate %12, %13 in 1 : vector<8x1xf32>, vector<8x255xf32> -> vector<8x256xf32>
    %15 = vector.extract_strided_slice %0 {offsets = [0, 1], sizes = [8, 255], strides = [1, 1]} : vector<8x256xf32> to vector<8x255xf32>
    %16 = vector.extract_strided_slice %0 {offsets = [0, 0], sizes = [8, 1], strides = [1, 1]} : vector<8x256xf32> to vector<8x1xf32>
    %17 = tpu.concatenate %15, %16 in 1 : vector<8x255xf32>, vector<8x1xf32> -> vector<8x256xf32>
    %18 = vector.extract_strided_slice %0 {offsets = [0, 15], sizes = [8, 241], strides = [1, 1]} : vector<8x256xf32> to vector<8x241xf32>
    %19 = vector.extract_strided_slice %0 {offsets = [0, 0], sizes = [8, 15], strides = [1, 1]} : vector<8x256xf32> to vector<8x15xf32>
    %20 = tpu.concatenate %18, %19 in 1 : vector<8x241xf32>, vector<8x15xf32> -> vector<8x256xf32>
    %21 = vector.extract_strided_slice %0 {offsets = [0, 16], sizes = [8, 240], strides = [1, 1]} : vector<8x256xf32> to vector<8x240xf32>
    %22 = vector.extract_strided_slice %0 {offsets = [0, 0], sizes = [8, 16], strides = [1, 1]} : vector<8x256xf32> to vector<8x16xf32>
    %23 = tpu.concatenate %21, %22 in 1 : vector<8x240xf32>, vector<8x16xf32> -> vector<8x256xf32>
    %24 = vector.extract_strided_slice %0 {offsets = [0, 17], sizes = [8, 239], strides = [1, 1]} : vector<8x256xf32> to vector<8x239xf32>
    %25 = vector.extract_strided_slice %0 {offsets = [0, 0], sizes = [8, 17], strides = [1, 1]} : vector<8x256xf32> to vector<8x17xf32>
    %26 = tpu.concatenate %24, %25 in 1 : vector<8x239xf32>, vector<8x17xf32> -> vector<8x256xf32>
    %27 = vector.shape_cast %5 : vector<8x256xf32> to vector<1x8x256xf32>
    %28 = vector.shape_cast %8 : vector<8x256xf32> to vector<1x8x256xf32>
    %29 = vector.shape_cast %11 : vector<8x256xf32> to vector<1x8x256xf32>
    %30 = vector.shape_cast %14 : vector<8x256xf32> to vector<1x8x256xf32>
    %31 = vector.shape_cast %0 : vector<8x256xf32> to vector<1x8x256xf32>
    %32 = vector.shape_cast %17 : vector<8x256xf32> to vector<1x8x256xf32>
    %33 = vector.shape_cast %20 : vector<8x256xf32> to vector<1x8x256xf32>
    %34 = vector.shape_cast %23 : vector<8x256xf32> to vector<1x8x256xf32>
    %35 = vector.shape_cast %26 : vector<8x256xf32> to vector<1x8x256xf32>
    %36 = tpu.concatenate %27, %28, %29, %30, %31, %32, %33, %34, %35 in 0 : vector<1x8x256xf32>, vector<1x8x256xf32>, vector<1x8x256xf32>, vector<1x8x256xf32>, vector<1x8x256xf32>, vector<1x8x256xf32>, vector<1x8x256xf32>, vector<1x8x256xf32>, vector<1x8x256xf32> -> vector<9x8x256xf32>
    %37 = vector.shape_cast %1 : vector<9x256xf32> to vector<9x1x256xf32>
    %38 = vector.broadcast %37 : vector<9x1x256xf32> to vector<9x8x256xf32>
    %39 = arith.mulf %36, %38 : vector<9x8x256xf32>
    %40 = vector.shape_cast %39 : vector<9x8x256xf32> to vector<72x256xf32>
    %cst = arith.constant dense<0.000000e+00> : vector<8x256xf32>
    %41 = tpu.matmul %2, %40, %cst {dimension_numbers = #tpu.dot_dimension_numbers<[1], [0], [0], [1], [0, 0, 1, 1], [], []>} : vector<8x72xf32>, vector<72x256xf32>, vector<8x256xf32> -> vector<8x256xf32>
    %42 = arith.negf %41 : vector<8x256xf32>
    %43 = math.exp %42 : vector<8x256xf32>
    %cst_5 = arith.constant 1.000000e+00 : f32
    %44 = vector.broadcast %cst_5 : f32 to vector<8x256xf32>
    %45 = arith.addf %44, %43 : vector<8x256xf32>
    %46 = arith.divf %44, %45 : vector<8x256xf32>
    %47 = arith.mulf %41, %46 : vector<8x256xf32>
    %c0_6 = arith.constant 0 : index
    %c0_7 = arith.constant 0 : index
    %48 = vector.load %arg3[%c0_6, %c0_7] : memref<8x72xf32, #tpu.memory_space<vmem>>, vector<8x72xf32>
    %49 = vector.extract_strided_slice %47 {offsets = [0, 239], sizes = [8, 17], strides = [1, 1]} : vector<8x256xf32> to vector<8x17xf32>
    %50 = vector.extract_strided_slice %47 {offsets = [0, 0], sizes = [8, 239], strides = [1, 1]} : vector<8x256xf32> to vector<8x239xf32>
    %51 = tpu.concatenate %49, %50 in 1 : vector<8x17xf32>, vector<8x239xf32> -> vector<8x256xf32>
    %52 = vector.extract_strided_slice %47 {offsets = [0, 240], sizes = [8, 16], strides = [1, 1]} : vector<8x256xf32> to vector<8x16xf32>
    %53 = vector.extract_strided_slice %47 {offsets = [0, 0], sizes = [8, 240], strides = [1, 1]} : vector<8x256xf32> to vector<8x240xf32>
    %54 = tpu.concatenate %52, %53 in 1 : vector<8x16xf32>, vector<8x240xf32> -> vector<8x256xf32>
    %55 = vector.extract_strided_slice %47 {offsets = [0, 241], sizes = [8, 15], strides = [1, 1]} : vector<8x256xf32> to vector<8x15xf32>
    %56 = vector.extract_strided_slice %47 {offsets = [0, 0], sizes = [8, 241], strides = [1, 1]} : vector<8x256xf32> to vector<8x241xf32>
    %57 = tpu.concatenate %55, %56 in 1 : vector<8x15xf32>, vector<8x241xf32> -> vector<8x256xf32>
    %58 = vector.extract_strided_slice %47 {offsets = [0, 255], sizes = [8, 1], strides = [1, 1]} : vector<8x256xf32> to vector<8x1xf32>
    %59 = vector.extract_strided_slice %47 {offsets = [0, 0], sizes = [8, 255], strides = [1, 1]} : vector<8x256xf32> to vector<8x255xf32>
    %60 = tpu.concatenate %58, %59 in 1 : vector<8x1xf32>, vector<8x255xf32> -> vector<8x256xf32>
    %61 = vector.extract_strided_slice %47 {offsets = [0, 1], sizes = [8, 255], strides = [1, 1]} : vector<8x256xf32> to vector<8x255xf32>
    %62 = vector.extract_strided_slice %47 {offsets = [0, 0], sizes = [8, 1], strides = [1, 1]} : vector<8x256xf32> to vector<8x1xf32>
    %63 = tpu.concatenate %61, %62 in 1 : vector<8x255xf32>, vector<8x1xf32> -> vector<8x256xf32>
    %64 = vector.extract_strided_slice %47 {offsets = [0, 15], sizes = [8, 241], strides = [1, 1]} : vector<8x256xf32> to vector<8x241xf32>
    %65 = vector.extract_strided_slice %47 {offsets = [0, 0], sizes = [8, 15], strides = [1, 1]} : vector<8x256xf32> to vector<8x15xf32>
    %66 = tpu.concatenate %64, %65 in 1 : vector<8x241xf32>, vector<8x15xf32> -> vector<8x256xf32>
    %67 = vector.extract_strided_slice %47 {offsets = [0, 16], sizes = [8, 240], strides = [1, 1]} : vector<8x256xf32> to vector<8x240xf32>
    %68 = vector.extract_strided_slice %47 {offsets = [0, 0], sizes = [8, 16], strides = [1, 1]} : vector<8x256xf32> to vector<8x16xf32>
    %69 = tpu.concatenate %67, %68 in 1 : vector<8x240xf32>, vector<8x16xf32> -> vector<8x256xf32>
    %70 = vector.extract_strided_slice %47 {offsets = [0, 17], sizes = [8, 239], strides = [1, 1]} : vector<8x256xf32> to vector<8x239xf32>
    %71 = vector.extract_strided_slice %47 {offsets = [0, 0], sizes = [8, 17], strides = [1, 1]} : vector<8x256xf32> to vector<8x17xf32>
    %72 = tpu.concatenate %70, %71 in 1 : vector<8x239xf32>, vector<8x17xf32> -> vector<8x256xf32>
    %73 = vector.shape_cast %51 : vector<8x256xf32> to vector<1x8x256xf32>
    %74 = vector.shape_cast %54 : vector<8x256xf32> to vector<1x8x256xf32>
    %75 = vector.shape_cast %57 : vector<8x256xf32> to vector<1x8x256xf32>
    %76 = vector.shape_cast %60 : vector<8x256xf32> to vector<1x8x256xf32>
    %77 = vector.shape_cast %47 : vector<8x256xf32> to vector<1x8x256xf32>
    %78 = vector.shape_cast %63 : vector<8x256xf32> to vector<1x8x256xf32>
    %79 = vector.shape_cast %66 : vector<8x256xf32> to vector<1x8x256xf32>
    %80 = vector.shape_cast %69 : vector<8x256xf32> to vector<1x8x256xf32>
    %81 = vector.shape_cast %72 : vector<8x256xf32> to vector<1x8x256xf32>
    %82 = tpu.concatenate %73, %74, %75, %76, %77, %78, %79, %80, %81 in 0 : vector<1x8x256xf32>, vector<1x8x256xf32>, vector<1x8x256xf32>, vector<1x8x256xf32>, vector<1x8x256xf32>, vector<1x8x256xf32>, vector<1x8x256xf32>, vector<1x8x256xf32>, vector<1x8x256xf32> -> vector<9x8x256xf32>
    %83 = vector.shape_cast %1 : vector<9x256xf32> to vector<9x1x256xf32>
    %84 = vector.broadcast %83 : vector<9x1x256xf32> to vector<9x8x256xf32>
    %85 = arith.mulf %82, %84 : vector<9x8x256xf32>
    %86 = vector.shape_cast %85 : vector<9x8x256xf32> to vector<72x256xf32>
    %cst_8 = arith.constant dense<0.000000e+00> : vector<8x256xf32>
    %87 = tpu.matmul %48, %86, %cst_8 {dimension_numbers = #tpu.dot_dimension_numbers<[1], [0], [0], [1], [0, 0, 1, 1], [], []>} : vector<8x72xf32>, vector<72x256xf32>, vector<8x256xf32> -> vector<8x256xf32>
    %c0_9 = arith.constant 0 : index
    %c0_10 = arith.constant 0 : index
    %88 = vector.load %arg4[%c0_9, %c0_10] : memref<8x1xf32, #tpu.memory_space<vmem>>, vector<8x1xf32>
    %89 = vector.broadcast %88 : vector<8x1xf32> to vector<8x256xf32>
    %90 = arith.addf %87, %89 : vector<8x256xf32>
    %91 = arith.addf %90, %0 : vector<8x256xf32>
    %c0_11 = arith.constant 0 : index
    %c0_12 = arith.constant 0 : index
    %92 = vector.load %arg6[%c0_11, %c0_12] : memref<8x256xf32, #tpu.memory_space<vmem>>, vector<8x256xf32>
    tpu.vector_store %arg6[%c0_11, %c0_12], %91 {strides = array<i32>} : memref<8x256xf32, #tpu.memory_space<vmem>>, vector<8x256xf32>,
    return
  }
  func.func @transform_0(%arg0: i32) -> (i32, i32) {
    %c0_i32 = arith.constant 0 : i32
    %c0_i32_0 = arith.constant 0 : i32
    return %c0_i32, %arg0 : i32, i32
  }
  func.func @transform_1(%arg0: i32) -> (i32, i32) {
    %c0_i32 = arith.constant 0 : i32
    %c0_i32_0 = arith.constant 0 : i32
    %c0_i32_1 = arith.constant 0 : i32
    return %c0_i32, %c0_i32_0 : i32, i32
  }
  func.func @transform_2(%arg0: i32) -> (i32, i32) {
    %c0_i32 = arith.constant 0 : i32
    %c0_i32_0 = arith.constant 0 : i32
    %c0_i32_1 = arith.constant 0 : i32
    return %c0_i32, %c0_i32_0 : i32, i32
  }
  func.func @transform_3(%arg0: i32) -> (i32, i32) {
    %c0_i32 = arith.constant 0 : i32
    %c0_i32_0 = arith.constant 0 : i32
    %c0_i32_1 = arith.constant 0 : i32
    return %c0_i32, %c0_i32_0 : i32, i32
  }
  func.func @transform_4(%arg0: i32) -> (i32, i32) {
    %c0_i32 = arith.constant 0 : i32
    %c0_i32_0 = arith.constant 0 : i32
    %c0_i32_1 = arith.constant 0 : i32
    return %c0_i32, %c0_i32_0 : i32, i32
  }
  func.func @transform_5(%arg0: i32) -> (i32, i32) {
    %c0_i32 = arith.constant 0 : i32
    %c0_i32_0 = arith.constant 0 : i32
    return %c0_i32, %arg0 : i32, i32
  }
}

</mosaic_0001>

<llo_original>
// kernel: encoder_block.1
$region0: #{encoder_block.1}
  #allocation0 [shape = 'u32[]', space=smem, size = 0x4, offset = 0x4, fixed_abs, tag = 'smem constant byte address 0x4 - core index']
  #allocation1 [shape = 'u32[72,128]{1,0:T(1,128)}', space=vmem, size = 0x9000, scoped, tag = 'internal scratch']
  %s0 = inlined_call_operand.vmem [shape: f32[8,512], index: 0, kind: input, shape index: {}]
  %s1 = inlined_call_operand.vmem [shape: f32[8,72], index: 1, kind: input, shape index: {}]
  %s2 = inlined_call_operand.vmem [shape: f32[8,72], index: 2, kind: input, shape index: {}]
  %s3 = inlined_call_operand.vmem [shape: f32[8,1], index: 3, kind: input, shape index: {}]
  %s4 = inlined_call_operand.vmem [shape: f32[9,256], index: 4, kind: input, shape index: {}]
  %s5 = inlined_call_operand.vmem [shape: f32[8,512], index: 5, kind: output, shape index: {}]
  %s6 = sld [smem:[#allocation0]]
  $region53: #{encoder_block.1} parent=0
    _
  %s8 = ssub.s32 1, %s6
  %s9 = scalar_select 0, %s8, %s6
  loop: start=0, step=1, limit=4
  $region2: #{encoder_block.1} parent=0 // loop_pre_header
    _
  $region3: #{encoder_block.1} parent=0 // loop_header
    %s11 = sphi 0, %s15
    %p12 = scmp.ge.s32.totalorder %s11, 4
    %s21 = sphi 0, %s23
    %s24 = sphi 0, %s21
    %s25 = sphi 0, %s24
    %s41 = sphi 0, %s25
    %s45 = sphi 0, %s45
    %s47 = sphi 0, %s45
    %s48 = sphi 0, %s47
    %s62 = sphi 0, %s48
    %s66 = sphi 0, %s66
    %s68 = sphi 0, %s66
    %s69 = sphi 0, %s68
    %s83 = sphi 0, %s69
    %s87 = sphi 0, %s87
    %s89 = sphi 0, %s87
    %s90 = sphi 0, %s89
    %s104 = sphi 0, %s90
    %s108 = sphi 0, %s108
    %s110 = sphi 0, %s108
    %s111 = sphi 0, %s110
    %s125 = sphi 0, %s111
    %s131 = sphi 0, %s133
    %s134 = sphi 0, %s131
    %s135 = sphi 0, %s134
    %s151 = sphi 0, %s135
  $region4: #{encoder_block.1} parent=0 // loop_header_branch
    %14 = sbr.rel (%p12) target = $region8
  $region5: #{encoder_block.1} parent=0 // loop_body
    %s16 = ssub.s32 %s11, 1
    %s17 = ssub.s32 %s11, 2
    %s18 = sadd.s32 %s11, 1
    %s19 = ssub.s32 %s11, %s18
    %p20 = scmp.eq.s32.totalorder %s19, 0
    %s22 = sadd.s32 %s21, 1
    %s23 = scalar_select %p20, %s21, %s22
    %p26 = pneg %p20
    %p27 = scmp.eq.s32.totalorder %s11, 1
    %p28 = por %p26, %p27
    %p29 = scmp.ne.s32.totalorder %s21, %s24
    %p30 = scmp.eq.s32.totalorder %s11, 0
    %p31 = por %p29, %p30
    %p32 = scmp.ne.s32.totalorder %s21, %s24
    %p33 = scmp.eq.s32.totalorder %s16, 1
    %p34 = por %p32, %p33
    %p35 = scmp.ne.s32.totalorder %s24, %s25
    %p36 = scmp.eq.s32.totalorder %s16, 0
    %p37 = por %p35, %p36
    %p38 = scmp.ne.s32.totalorder %s24, %s25
    %p39 = scmp.eq.s32.totalorder %s17, 1
    %p40 = por %p38, %p39
    %p42 = scmp.ne.s32.totalorder %s25, %s41
    %p43 = scmp.eq.s32.totalorder %s17, 0
    %p44 = por %p42, %p43
    %s46 = sadd.s32 %s45, 1
    %p49 = scmp.eq.s32.totalorder %s11, 1
    %p50 = scmp.ne.s32.totalorder %s45, %s47
    %p51 = scmp.eq.s32.totalorder %s11, 0
    %p52 = por %p50, %p51
    %p53 = scmp.ne.s32.totalorder %s45, %s47
    %p54 = scmp.eq.s32.totalorder %s16, 1
    %p55 = por %p53, %p54
    %p56 = scmp.ne.s32.totalorder %s47, %s48
    %p57 = scmp.eq.s32.totalorder %s16, 0
    %p58 = por %p56, %p57
    %p59 = scmp.ne.s32.totalorder %s47, %s48
    %p60 = scmp.eq.s32.totalorder %s17, 1
    %p61 = por %p59, %p60
    %p63 = scmp.ne.s32.totalorder %s48, %s62
    %p64 = scmp.eq.s32.totalorder %s17, 0
    %p65 = por %p63, %p64
    %s67 = sadd.s32 %s66, 1
    %p70 = scmp.eq.s32.totalorder %s11, 1
    %p71 = scmp.ne.s32.totalorder %s66, %s68
    %p72 = scmp.eq.s32.totalorder %s11, 0
    %p73 = por %p71, %p72
    %p74 = scmp.ne.s32.totalorder %s66, %s68
    %p75 = scmp.eq.s32.totalorder %s16, 1
    %p76 = por %p74, %p75
    %p77 = scmp.ne.s32.totalorder %s68, %s69
    %p78 = scmp.eq.s32.totalorder %s16, 0
    %p79 = por %p77, %p78
    %p80 = scmp.ne.s32.totalorder %s68, %s69
    %p81 = scmp.eq.s32.totalorder %s17, 1
    %p82 = por %p80, %p81
    %p84 = scmp.ne.s32.totalorder %s69, %s83
    %p85 = scmp.eq.s32.totalorder %s17, 0
    %p86 = por %p84, %p85
    %s88 = sadd.s32 %s87, 1
    %p91 = scmp.eq.s32.totalorder %s11, 1
    %p92 = scmp.ne.s32.totalorder %s87, %s89
    %p93 = scmp.eq.s32.totalorder %s11, 0
    %p94 = por %p92, %p93
    %p95 = scmp.ne.s32.totalorder %s87, %s89
    %p96 = scmp.eq.s32.totalorder %s16, 1
    %p97 = por %p95, %p96
    %p98 = scmp.ne.s32.totalorder %s89, %s90
    %p99 = scmp.eq.s32.totalorder %s16, 0
    %p100 = por %p98, %p99
    %p101 = scmp.ne.s32.totalorder %s89, %s90
    %p102 = scmp.eq.s32.totalorder %s17, 1
    %p103 = por %p101, %p102
    %p105 = scmp.ne.s32.totalorder %s90, %s104
    %p106 = scmp.eq.s32.totalorder %s17, 0
    %p107 = por %p105, %p106
    %s109 = sadd.s32 %s108, 1
    %p112 = scmp.eq.s32.totalorder %s11, 1
    %p113 = scmp.ne.s32.totalorder %s108, %s110
    %p114 = scmp.eq.s32.totalorder %s11, 0
    %p115 = por %p113, %p114
    %p116 = scmp.ne.s32.totalorder %s108, %s110
    %p117 = scmp.eq.s32.totalorder %s16, 1
    %p118 = por %p116, %p117
    %p119 = scmp.ne.s32.totalorder %s110, %s111
    %p120 = scmp.eq.s32.totalorder %s16, 0
    %p121 = por %p119, %p120
    %p122 = scmp.ne.s32.totalorder %s110, %s111
    %p123 = scmp.eq.s32.totalorder %s17, 1
    %p124 = por %p122, %p123
    %p126 = scmp.ne.s32.totalorder %s111, %s125
    %p127 = scmp.eq.s32.totalorder %s17, 0
    %p128 = por %p126, %p127
    %s129 = ssub.s32 %s11, %s18
    %p130 = scmp.eq.s32.totalorder %s129, 0
    %s132 = sadd.s32 %s131, 1
    %s133 = scalar_select %p130, %s131, %s132
    %p136 = pneg %p130
    %p137 = scmp.eq.s32.totalorder %s11, 1
    %p138 = por %p136, %p137
    %p139 = scmp.ne.s32.totalorder %s131, %s134
    %p140 = scmp.eq.s32.totalorder %s11, 0
    %p141 = por %p139, %p140
    %p142 = scmp.ne.s32.totalorder %s131, %s134
    %p143 = scmp.eq.s32.totalorder %s16, 1
    %p144 = por %p142, %p143
    %p145 = scmp.ne.s32.totalorder %s134, %s135
    %p146 = scmp.eq.s32.totalorder %s16, 0
    %p147 = por %p145, %p146
    %p148 = scmp.ne.s32.totalorder %s134, %s135
    %p149 = scmp.eq.s32.totalorder %s17, 1
    %p150 = por %p148, %p149
    %p152 = scmp.ne.s32.totalorder %s135, %s151
    %p153 = scmp.eq.s32.totalorder %s17, 0
    %p154 = por %p152, %p153
    %p155 = scmp.le.s32.totalorder 1, %s11
    %p156 = scmp.lt.s32.totalorder %s11, 3
    %p157 = pnand %p155, %p156
    %p158 = pneg %p157
    // Predicated region
    $region9: #{encoder_block.1} parent=5 // pred_check
      _
    $region10: #{encoder_block.1} parent=5 // pred_check_branch
      %160 = sbr.rel (%p157) target = $region12
    $region11: #{encoder_block.1} parent=5 // pred_region
      %s161 = ssub.s32 %s11, 1
      // Predicated region
      $region13: #{encoder_block.1} parent=11 // pred_check
        %p162 = pneg %p58
      $region14: #{encoder_block.1} parent=11 // pred_check_branch
        %164 = sbr.rel (%p162) target = $region16
      $region15: #{encoder_block.1} parent=11 // pred_region
        _
      $region16: #{encoder_block.1} parent=11 // pred_fallthru
        _
      // Predicated region
      $region17: #{encoder_block.1} parent=11 // pred_check
        %p165 = pneg %p79
      $region18: #{encoder_block.1} parent=11 // pred_check_branch
        %167 = sbr.rel (%p165) target = $region20
      $region19: #{encoder_block.1} parent=11 // pred_region
        _
      $region20: #{encoder_block.1} parent=11 // pred_fallthru
        _
      // Predicated region
      $region21: #{encoder_block.1} parent=11 // pred_check
        %p168 = pneg %p100
      $region22: #{encoder_block.1} parent=11 // pred_check_branch
        %170 = sbr.rel (%p168) target = $region24
      $region23: #{encoder_block.1} parent=11 // pred_region
        _
      $region24: #{encoder_block.1} parent=11 // pred_fallthru
        _
      // Predicated region
      $region25: #{encoder_block.1} parent=11 // pred_check
        %p171 = pneg %p121
      $region26: #{encoder_block.1} parent=11 // pred_check_branch
        %173 = sbr.rel (%p171) target = $region28
      $region27: #{encoder_block.1} parent=11 // pred_region
        _
      $region28: #{encoder_block.1} parent=11 // pred_fallthru
        _
    $region12: #{encoder_block.1} parent=5 // pred_fallthru
      _
    %p174 = scmp.lt.s32.totalorder %s11, 2
    // Predicated region
    $region29: #{encoder_block.1} parent=5 // pred_check
      %p175 = pneg %p174
    $region30: #{encoder_block.1} parent=5 // pred_check_branch
      %177 = sbr.rel (%p175) target = $region32
    $region31: #{encoder_block.1} parent=5 // pred_region
      // Predicated region
      $region33: #{encoder_block.1} parent=31 // pred_check
        %p178 = pneg %p31
      $region34: #{encoder_block.1} parent=31 // pred_check_branch
        %180 = sbr.rel (%p178) target = $region36
      $region35: #{encoder_block.1} parent=31 // pred_region
        %s181 = smul.u32 2, %s11
        %p182 = scmp.lt.s32.totalorder %s181, 3
        %s183 = scalar_select %p182, %s181, 3
        %s184 = smul.addr %s183, 8
        %s185 = scalar_lea.vmem %s0, %s184
        %s186 = smul.u32 2, %s11
      $region36: #{encoder_block.1} parent=31 // pred_fallthru
        _
    $region32: #{encoder_block.1} parent=5 // pred_fallthru
      _
    %p187 = scmp.le.s32.totalorder 1, %s11
    %p188 = scmp.lt.s32.totalorder %s11, 3
    %p189 = pnand %p187, %p188
    %p190 = pneg %p189
    // Predicated region
    $region37: #{encoder_block.1} parent=5 // pred_check
      _
    $region38: #{encoder_block.1} parent=5 // pred_check_branch
      %192 = sbr.rel (%p189) target = $region40
    $region39: #{encoder_block.1} parent=5 // pred_region
      %s193 = ssub.s32 %s11, 1
      %s194 = smul.u32 2, %s16
      %p195 = scmp.lt.s32.totalorder %s194, 3
      %s196 = scalar_select %p195, %s194, 3
      %s197 = smul.addr %s196, 8
      %s198 = scalar_lea.vmem %s0, %s197
      %p199 = pneg %p37
      %p200 = pneg %p34
      %p201 = pneg %p58
      %p202 = pneg %p55
      %p203 = pneg %p79
      %p204 = pneg %p76
      %p205 = pneg %p100
      %p206 = pneg %p97
      %p207 = pneg %p121
      %p208 = pneg %p118
      %p209 = pneg %p147
      %p210 = pneg %p144
      %s211 = smul.u32 2, %s16
      %p212 = scmp.lt.s32.totalorder %s211, 3
      %s213 = scalar_select %p212, %s211, 3
      %s214 = smul.addr %s213, 8
      %s215 = scalar_lea.vmem %s5, %s214
      %s216 = smul.u32 2, %s16
      %p217 = scmp.lt.s32.totalorder %s216, 3
      %s218 = scalar_select %p217, %s216, 3
      %s219 = smul.addr %s218, 8
      %s220 = scalar_lea.vmem %s0, %s219
      %s221 = smul.u32 2, %s16
      %s222 = smul.u32 2, %s16
      %p223 = scmp.lt.s32.totalorder %s222, 3
      %s224 = scalar_select %p223, %s222, 3
      %s225 = smul.addr %s224, 8
      %s226 = scalar_lea.vmem %s5, %s225
      %s227 = smul.u32 2, %s16
      %v228 = vld [vmem:[%s220] sm:$0xff]
      %v229 = vld [vmem:[%s220 + $0x8] sm:$0xff]
      %v230 = vld [vmem:[%s4] sm:$0xff]
      %v231 = vld [vmem:[%s4 + $0x8] sm:$0xff]
      %v232 = vld [vmem:[%s4 + $0x10] sm:$0x1]
      %v233 = vld [vmem:[%s4 + $0x18] sm:$0x1]
      %v234 = vld [vmem:[%s1] sm:$0xff]
      %236 = vrot.lane.b32.xlu0 %v229, 17
      %v237 = vpop.permute.xlu0 %236
      %240 = vrot.lane.b32.xlu0 %v228, 17
      %v241 = vpop.permute.xlu0 %240
      %vm242 = vcmask 138240
      %v243 = vsel %vm242, %v241, %v237
      %v246 = vsel %vm242, %v237, %v241
      %247 = vrot.lane.b32.xlu0 %v229, 16
      %v248 = vpop.permute.xlu0 %247
      %250 = vrot.lane.b32.xlu0 %v228, 16
      %v251 = vpop.permute.xlu0 %250
      %vm252 = vcmask 130048
      %v253 = vsel %vm252, %v251, %v248
      %v256 = vsel %vm252, %v248, %v251
      %257 = vrot.lane.b32.xlu0 %v229, 15
      %v258 = vpop.permute.xlu0 %257
      %260 = vrot.lane.b32.xlu0 %v228, 15
      %v261 = vpop.permute.xlu0 %260
      %vm262 = vcmask 121856
      %v263 = vsel %vm262, %v261, %v258
      %v266 = vsel %vm262, %v258, %v261
      %267 = vrot.lane.b32.xlu0 %v229, 1
      %v268 = vpop.permute.xlu0 %267
      %270 = vrot.lane.b32.xlu0 %v228, 1
      %v271 = vpop.permute.xlu0 %270
      %vm272 = vcmask 7168
      %v273 = vsel %vm272, %v271, %v268
      %v276 = vsel %vm272, %v268, %v271
      %277 = vrot.lane.b32.xlu0 %v228, 127
      %v278 = vpop.permute.xlu0 %277
      %279 = vrot.lane.b32.xlu0 %v229, 127
      %v280 = vpop.permute.xlu0 %279
      %vm281 = vcmask 1039360
      %v282 = vsel %vm281, %v278, %v280
      %v286 = vsel %vm281, %v280, %v278
      %287 = vrot.lane.b32.xlu0 %v228, 113
      %v288 = vpop.permute.xlu0 %287
      %289 = vrot.lane.b32.xlu0 %v229, 113
      %v290 = vpop.permute.xlu0 %289
      %vm291 = vcmask 924672
      %v292 = vsel %vm291, %v288, %v290
      %v296 = vsel %vm291, %v290, %v288
      %297 = vrot.lane.b32.xlu0 %v228, 112
      %v298 = vpop.permute.xlu0 %297
      %299 = vrot.lane.b32.xlu0 %v229, 112
      %v300 = vpop.permute.xlu0 %299
      %vm301 = vcmask 916480
      %v302 = vsel %vm301, %v298, %v300
      %v306 = vsel %vm301, %v300, %v298
      %307 = vrot.lane.b32.xlu0 %v228, 111
      %v308 = vpop.permute.xlu0 %307
      %309 = vrot.lane.b32.xlu0 %v229, 111
      %v310 = vpop.permute.xlu0 %309
      %vm311 = vcmask 908288
      %v312 = vsel %vm311, %v308, %v310
      %v316 = vsel %vm311, %v310, %v308
      %v321 = vrot.slane %v231, 7
      %v322 = vrot.slane %v233, 7
      %vm323 = vcmask 1040384
      %v324 = vsel %vm323, %v230, %v321
      %vm325 = vcmask 1041409
      %v326 = vsel %vm325, %v230, %v321
      %v327 = vrot.slane %v326, 1
      %vm328 = vcmask 1042434
      %v329 = vsel %vm328, %v230, %v321
      %v330 = vrot.slane %v329, 2
      %vm331 = vcmask 1043459
      %v332 = vsel %vm331, %v230, %v321
      %v333 = vrot.slane %v332, 3
      %vm334 = vcmask 1044484
      %v335 = vsel %vm334, %v230, %v321
      %v336 = vrot.slane %v335, 4
      %vm337 = vcmask 1045509
      %v338 = vsel %vm337, %v230, %v321
      %v339 = vrot.slane %v338, 5
      %vm340 = vcmask 1046534
      %v341 = vsel %vm340, %v230, %v321
      %v342 = vrot.slane %v341, 6
      %vm343 = vcmask 1046528
      %v344 = vsel %vm343, %v321, %v230
      %v345 = vrot.slane %v344, 7
      %v346 = vsel %vm323, %v232, %v322
      %v347 = vperm.slane %v324, 0
      %v348 = vperm.slane %v324, 1
      %v349 = vperm.slane %v327, 0
      %v350 = vperm.slane %v327, 1
      %v351 = vperm.slane %v330, 0
      %v352 = vperm.slane %v330, 1
      %v353 = vperm.slane %v333, 0
      %v354 = vperm.slane %v333, 1
      %v355 = vperm.slane %v336, 0
      %v356 = vperm.slane %v336, 1
      %v357 = vperm.slane %v339, 0
      %v358 = vperm.slane %v339, 1
      %v359 = vperm.slane %v342, 0
      %v360 = vperm.slane %v342, 1
      %v361 = vperm.slane %v345, 0
      %v362 = vperm.slane %v345, 1
      %v363 = vperm.slane %v346, 0
      %v364 = vperm.slane %v346, 1
      %v383 = vmul.f32 %v246, %v347
      %v384 = vmul.f32 %v243, %v348
      %v385 = vmul.f32 %v256, %v349
      %v386 = vmul.f32 %v253, %v350
      %v387 = vmul.f32 %v266, %v351
      %v388 = vmul.f32 %v263, %v352
      %v389 = vmul.f32 %v276, %v353
      %v390 = vmul.f32 %v273, %v354
      %v391 = vmul.f32 %v228, %v355
      %v392 = vmul.f32 %v229, %v356
      %v393 = vmul.f32 %v282, %v357
      %v394 = vmul.f32 %v286, %v358
      %v395 = vmul.f32 %v292, %v359
      %v396 = vmul.f32 %v296, %v360
      %v397 = vmul.f32 %v302, %v361
      %v398 = vmul.f32 %v306, %v362
      %v399 = vmul.f32 %v312, %v363
      %v400 = vmul.f32 %v316, %v364
      %vm401 = vcmask 588800
      %v403 = vsel %vm401, %v234, 0
      %405 = vmatpush.msra.mxu0 0.0
      %406 = vmatpush.msra.mxu0 0.0
      %407 = vmatpush.msra.mxu0 0.0
      %408 = vmatpush.msra.mxu0 0.0
      %409 = vmatpush.msra.mxu0 0.0
      %410 = vmatpush.msra.mxu0 0.0
      %411 = vmatpush.msra.mxu0 0.0
      %412 = vmatpush.msra.mxu0 %v399
      %413 = vmatpush.msra.mxu0 %v397
      %414 = vmatpush.msra.mxu0 %v395
      %415 = vmatpush.msra.mxu0 %v393
      %416 = vmatpush.msra.mxu0 %v391
      %417 = vmatpush.msra.mxu0 %v389
      %418 = vmatpush.msra.mxu0 %v387
      %419 = vmatpush.msra.mxu0 %v385
      %420 = vmatpush.msra.mxu0 %v383
      %421 = vmatmul.f32.gmra.mxu0 %v403
      %v422 = vpop.f32.mrf.mxu0
      %v423 = vadd.f32 0.0, %v422
      %424 = vdwg.mxu0
      %425 = vmatpush.msra.mxu0 0.0
      %426 = vmatpush.msra.mxu0 0.0
      %427 = vmatpush.msra.mxu0 0.0
      %428 = vmatpush.msra.mxu0 0.0
      %429 = vmatpush.msra.mxu0 0.0
      %430 = vmatpush.msra.mxu0 0.0
      %431 = vmatpush.msra.mxu0 0.0
      %432 = vmatpush.msra.mxu0 %v400
      %433 = vmatpush.msra.mxu0 %v398
      %434 = vmatpush.msra.mxu0 %v396
      %435 = vmatpush.msra.mxu0 %v394
      %436 = vmatpush.msra.mxu0 %v392
      %437 = vmatpush.msra.mxu0 %v390
      %438 = vmatpush.msra.mxu0 %v388
      %439 = vmatpush.msra.mxu0 %v386
      %440 = vmatpush.msra.mxu0 %v384
      %441 = vmatmul.f32.gmra.mxu0 %v403
      %v442 = vpop.f32.mrf.mxu0
      %v443 = vadd.f32 0.0, %v442
      %444 = vdwg.mxu0
      %v445 = vxor.u32 %v423, 2147483648
      %v446 = vxor.u32 %v443, 2147483648
      %v447 = vmul.f32 %v445, 1.442695
      %v448 = vpow.pop %v447
      %v449 = vmul.f32 %v446, 1.442695
      %v450 = vpow.pop %v449
      %v451 = vadd.f32 %v448, 1.0
      %v452 = vadd.f32 %v450, 1.0
      %v453 = vrcp.pop %v451
      %v454 = vmul.f32 %v451, %v453
      %v455 = vsub.f32 1.0, %v454
      %v456 = vmul.f32 %v453, %v455
      %v457 = vadd.f32 %v453, %v456
      %vm458 = vweird.f32 %v451
      %vm459 = vweird.f32 %v453
      %vm460 = vmor %vm458, %vm459
      %v461 = vsel %vm460, %v453, %v457
      %v462 = vand.u32 2147483647, %v451
      %vm463 = vcmp.eq.f32.partialorder %v462, 8.507059e+37
      %v464 = vand.u32 %v451, 2147483648
      %v465 = vor.u32 1.1754944e-38, %v464
      %v466 = vsel %vm463, %v465, %v461
      %v467 = vmul.f32 1.0, %v466
      %v468 = vrcp.pop %v452
      %v469 = vmul.f32 %v452, %v468
      %v470 = vsub.f32 1.0, %v469
      %v471 = vmul.f32 %v468, %v470
      %v472 = vadd.f32 %v468, %v471
      %vm473 = vweird.f32 %v452
      %vm474 = vweird.f32 %v468
      %vm475 = vmor %vm473, %vm474
      %v476 = vsel %vm475, %v468, %v472
      %v477 = vand.u32 2147483647, %v452
      %vm478 = vcmp.eq.f32.partialorder %v477, 8.507059e+37
      %v479 = vand.u32 %v452, 2147483648
      %v480 = vor.u32 1.1754944e-38, %v479
      %v481 = vsel %vm478, %v480, %v476
      %v482 = vmul.f32 1.0, %v481
      %v483 = vmul.f32 %v423, %v467
      %v484 = vmul.f32 %v443, %v482
      %v485 = vld [vmem:[%s2] sm:$0xff]
      %487 = vrot.lane.b32.xlu0 %v484, 17
      %v488 = vpop.permute.xlu0 %487
      %491 = vrot.lane.b32.xlu0 %v483, 17
      %v492 = vpop.permute.xlu0 %491
      %v493 = vsel %vm242, %v492, %v488
      %v496 = vsel %vm242, %v488, %v492
      %497 = vrot.lane.b32.xlu0 %v484, 16
      %v498 = vpop.permute.xlu0 %497
      %500 = vrot.lane.b32.xlu0 %v483, 16
      %v501 = vpop.permute.xlu0 %500
      %v502 = vsel %vm252, %v501, %v498
      %v505 = vsel %vm252, %v498, %v501
      %506 = vrot.lane.b32.xlu0 %v484, 15
      %v507 = vpop.permute.xlu0 %506
      %509 = vrot.lane.b32.xlu0 %v483, 15
      %v510 = vpop.permute.xlu0 %509
      %v511 = vsel %vm262, %v510, %v507
      %v514 = vsel %vm262, %v507, %v510
      %515 = vrot.lane.b32.xlu0 %v484, 1
      %v516 = vpop.permute.xlu0 %515
      %518 = vrot.lane.b32.xlu0 %v483, 1
      %v519 = vpop.permute.xlu0 %518
      %v520 = vsel %vm272, %v519, %v516
      %v523 = vsel %vm272, %v516, %v519
      %524 = vrot.lane.b32.xlu0 %v483, 127
      %v525 = vpop.permute.xlu0 %524
      %526 = vrot.lane.b32.xlu0 %v484, 127
      %v527 = vpop.permute.xlu0 %526
      %v528 = vsel %vm281, %v525, %v527
      %v532 = vsel %vm281, %v527, %v525
      %533 = vrot.lane.b32.xlu0 %v483, 113
      %v534 = vpop.permute.xlu0 %533
      %535 = vrot.lane.b32.xlu0 %v484, 113
      %v536 = vpop.permute.xlu0 %535
      %v537 = vsel %vm291, %v534, %v536
      %v541 = vsel %vm291, %v536, %v534
      %542 = vrot.lane.b32.xlu0 %v483, 112
      %v543 = vpop.permute.xlu0 %542
      %544 = vrot.lane.b32.xlu0 %v484, 112
      %v545 = vpop.permute.xlu0 %544
      %v546 = vsel %vm301, %v543, %v545
      %v550 = vsel %vm301, %v545, %v543
      %551 = vrot.lane.b32.xlu0 %v483, 111
      %v552 = vpop.permute.xlu0 %551
      %553 = vrot.lane.b32.xlu0 %v484, 111
      %v554 = vpop.permute.xlu0 %553
      %v555 = vsel %vm311, %v552, %v554
      %v559 = vsel %vm311, %v554, %v552
      %v560 = vmul.f32 %v496, %v347
      %v561 = vmul.f32 %v493, %v348
      %v562 = vmul.f32 %v505, %v349
      %v563 = vmul.f32 %v502, %v350
      %v564 = vmul.f32 %v514, %v351
      %v565 = vmul.f32 %v511, %v352
      %v566 = vmul.f32 %v523, %v353
      %v567 = vmul.f32 %v520, %v354
      %v568 = vmul.f32 %v483, %v355
      %v569 = vmul.f32 %v484, %v356
      %v570 = vmul.f32 %v528, %v357
      %v571 = vmul.f32 %v532, %v358
      %v572 = vmul.f32 %v537, %v359
      %v573 = vmul.f32 %v541, %v360
      %v574 = vmul.f32 %v546, %v361
      %v575 = vmul.f32 %v550, %v362
      %v576 = vmul.f32 %v555, %v363
      %v577 = vmul.f32 %v559, %v364
      %v578 = vld [vmem:[%s3] sm:$0xff]
      %580 = vset.pattern.permute.xlu0 0
      %581 = vperm.xlu0 %580, %v578
      %v582 = vpop.permute.xlu0 %581
      %v585 = vsel %vm401, %v485, 0
      %587 = vmatpush.msra.mxu0 0.0
      %588 = vmatpush.msra.mxu0 0.0
      %589 = vmatpush.msra.mxu0 0.0
      %590 = vmatpush.msra.mxu0 0.0
      %591 = vmatpush.msra.mxu0 0.0
      %592 = vmatpush.msra.mxu0 0.0
      %593 = vmatpush.msra.mxu0 0.0
      %594 = vmatpush.msra.mxu0 %v576
      %595 = vmatpush.msra.mxu0 %v574
      %596 = vmatpush.msra.mxu0 %v572
      %597 = vmatpush.msra.mxu0 %v570
      %598 = vmatpush.msra.mxu0 %v568
      %599 = vmatpush.msra.mxu0 %v566
      %600 = vmatpush.msra.mxu0 %v564
      %601 = vmatpush.msra.mxu0 %v562
      %602 = vmatpush.msra.mxu0 %v560
      %603 = vmatmul.f32.gmra.mxu0 %v585
      %v604 = vpop.f32.mrf.mxu0
      %v605 = vadd.f32 %v582, %v604
      %606 = vdwg.mxu0
      %607 = vmatpush.msra.mxu0 0.0
      %608 = vmatpush.msra.mxu0 0.0
      %609 = vmatpush.msra.mxu0 0.0
      %610 = vmatpush.msra.mxu0 0.0
      %611 = vmatpush.msra.mxu0 0.0
      %612 = vmatpush.msra.mxu0 0.0
      %613 = vmatpush.msra.mxu0 0.0
      %614 = vmatpush.msra.mxu0 %v577
      %615 = vmatpush.msra.mxu0 %v575
      %616 = vmatpush.msra.mxu0 %v573
      %617 = vmatpush.msra.mxu0 %v571
      %618 = vmatpush.msra.mxu0 %v569
      %619 = vmatpush.msra.mxu0 %v567
      %620 = vmatpush.msra.mxu0 %v565
      %621 = vmatpush.msra.mxu0 %v563
      %622 = vmatpush.msra.mxu0 %v561
      %623 = vmatmul.f32.gmra.mxu0 %v585
      %v624 = vpop.f32.mrf.mxu0
      %v625 = vadd.f32 %v582, %v624
      %626 = vdwg.mxu0
      %v627 = vadd.f32 %v605, %v228
      %v628 = vadd.f32 %v625, %v229
      %629 = vst [vmem:[%s226] sm:$0xff] %v627
      %630 = vst [vmem:[%s226 + $0x8] sm:$0xff] %v628
      %s631 = smul.u32 2, %s16
      %p632 = scmp.lt.s32.totalorder %s631, 3
      %s633 = scalar_select %p632, %s631, 3
      %s634 = smul.addr %s633, 8
      %s635 = scalar_lea.vmem %s5, %s634
      // Predicated region
      $region41: #{encoder_block.1} parent=39 // pred_check
        %p636 = pneg %p144
      $region42: #{encoder_block.1} parent=39 // pred_check_branch
        %638 = sbr.rel (%p636) target = $region44
      $region43: #{encoder_block.1} parent=39 // pred_region
        %s639 = smul.u32 2, %s16
      $region44: #{encoder_block.1} parent=39 // pred_fallthru
        _
    $region40: #{encoder_block.1} parent=5 // pred_fallthru
      _
    %p640 = scmp.le.s32.totalorder 2, %s11
    // Predicated region
    $region45: #{encoder_block.1} parent=5 // pred_check
      %p641 = pneg %p640
    $region46: #{encoder_block.1} parent=5 // pred_check_branch
      %643 = sbr.rel (%p641) target = $region48
    $region47: #{encoder_block.1} parent=5 // pred_region
      %s644 = ssub.s32 %s11, 2
      // Predicated region
      $region49: #{encoder_block.1} parent=47 // pred_check
        %p645 = pneg %p150
      $region50: #{encoder_block.1} parent=47 // pred_check_branch
        %647 = sbr.rel (%p645) target = $region52
      $region51: #{encoder_block.1} parent=47 // pred_region
        %s648 = smul.u32 2, %s17
        %p649 = scmp.lt.s32.totalorder %s648, 3
        %s650 = scalar_select %p649, %s648, 3
        %s651 = smul.addr %s650, 8
        %s652 = scalar_lea.vmem %s5, %s651
      $region52: #{encoder_block.1} parent=47 // pred_fallthru
        _
    $region48: #{encoder_block.1} parent=5 // pred_fallthru
      _
  $region6: #{encoder_block.1} parent=0 // loop_footer
    %s15 = sadd.s32 1, %s11
  $region7: #{encoder_block.1} parent=0 // loop_footer_branch
    %10 = sbr.rel target = $region3
  $region8: #{encoder_block.1} parent=0 // loop_exit
    _

</llo_original>
